<compile_context>
chip_gen: v5e
topology: v5e:2x2
jax: 0.10.0
libtpu: 0.0.40
codegen_flags: <defaults>
</compile_context>

<pallas_src>
import functools

import jax
import jax.numpy as jnp
from jax import lax
from jax.experimental import pallas as pl
from jax.experimental.pallas import tpu as pltpu


def _round_up(x, m):
    return (x + m - 1) // m * m


# ----------------------------- Pallas kernel ------------------------------- #

def _fused_mha_kernel(x_ref, qkv_w_ref, qkv_b_ref, proj_w_ref, proj_b_ref,
                      o_ref, q_scr, k_scr, v_scr, *, head, scale, n_valid):
    """Fused qkv-proj + multi-head attention + output-proj.

    x_ref:      (N_pad, dim)   full (padded) batch row, bf16, resident across
                               the query-tile axis
    qkv_w_ref:  (dim, 3*dim)   bf16, resident in VMEM across all grid steps
    qkv_b_ref:  (1, 3*dim)     f32
    proj_w_ref: (dim, dim)     bf16
    proj_b_ref: (1, dim)       f32
    o_ref:      (TQ, dim)      lane-dense output block
    q_scr/k_scr/v_scr: (N_pad, dim) bf16 VMEM scratch (per-batch K/V/Q cache)
    """
    qi = pl.program_id(1)
    n_pad, dim = x_ref.shape
    tq = o_ref.shape[0]
    hd = dim // head

    # --- Once per batch row: one full-width qkv matmul; cache bf16 Q/K/V. ---
    @pl.when(qi == 0)
    def _():
        x_full = x_ref[...]                                       # (N_pad, dim) bf16
        qkv = jnp.dot(x_full, qkv_w_ref[...],
                      preferred_element_type=jnp.float32)         # (N_pad, 3*dim) f32
        qkv = qkv + qkv_b_ref[...]
        q_scr[...] = (qkv[:, 0 * dim:1 * dim] * scale).astype(q_scr.dtype)
        k_scr[...] = qkv[:, 1 * dim:2 * dim].astype(k_scr.dtype)
        v_scr[...] = qkv[:, 2 * dim:3 * dim].astype(v_scr.dtype)

    # --- This query tile (softmax scale already folded into q_scr). ---
    q_start = pl.multiple_of(qi * tq, tq)
    q = q_scr[pl.ds(q_start, tq), :]                               # (tq, dim) bf16

    # Key-padding mask (static branch: only emitted when N was padded).
    if n_valid < n_pad:
        key_idx = lax.broadcasted_iota(jnp.int32, (tq, n_pad), 1)
        mask_bias = jnp.where(key_idx < n_valid, 0.0, -1e30).astype(jnp.float32)
    else:
        mask_bias = None

    acc = jnp.zeros((tq, dim), jnp.float32)
    for h in range(head):
        sl = slice(h * hd, (h + 1) * hd)
        q_h = q[:, sl]                                             # (tq, hd)    bf16
        k_h = k_scr[:, sl]                                         # (n_pad, hd) bf16
        v_h = v_scr[:, sl]                                         # (n_pad, hd) bf16

        # NT matmul on the MXU: contract head_dim of q with head_dim of k
        # directly (no k.T relayout).
        s = lax.dot_general(q_h, k_h,
                            dimension_numbers=(((1,), (1,)), ((), ())),
                            preferred_element_type=jnp.float32)    # (tq, n_pad) f32
        if mask_bias is not None:
            s = s + mask_bias

        # Softmax in f32 (max/exp/sum/reciprocal on the native VPU/EUP path).
        m = jnp.max(s, axis=-1, keepdims=True)
        p = jnp.exp(s - m)
        denom = jnp.sum(p, axis=-1, keepdims=True)
        p = p * pl.reciprocal(denom, approx=True)                  # EUP vrcp
        p = p.astype(jnp.bfloat16)

        attn_h = jnp.dot(p, v_h, preferred_element_type=jnp.float32)  # (tq, hd)

        # Head-merge fused into the output projection: static slice of the
        # resident proj_w, one f32 accumulator, no concatenate.
        acc = acc + jnp.dot(attn_h.astype(jnp.bfloat16), proj_w_ref[sl, :],
                            preferred_element_type=jnp.float32)       # (tq, dim)

    out = acc + proj_b_ref[...]                                    # (tq, dim) f32
    o_ref[...] = out.astype(o_ref.dtype)


# ------------------------------ Host wrapper -------------------------------- #

def multi_head_forward(x, params, *, head, q_tile=128):
    """Matches Muilt_head.forward (eval mode, dropout = identity)."""
    B, N, dim = x.shape
    assert dim % head == 0, "dim must be divisible by head"
    # PyTorch module: self.head_dim = dim / head ; self.dk = head_dim ** -0.5
    scale = float(dim / head) ** (-0.5)
    out_dtype = x.dtype

    # bf16 MXU operands; accumulation and biases stay f32 inside the kernel.
    x_bf = x.astype(jnp.bfloat16)
    qkv_w = params["qkv_w"].astype(jnp.bfloat16)                    # (dim, 3*dim)
    proj_w = params["proj_w"].astype(jnp.bfloat16)                  # (dim, dim)
    qkv_b = params["qkv_b"].reshape(1, 3 * dim).astype(jnp.float32)
    proj_b = params["proj_b"].reshape(1, dim).astype(jnp.float32)

    # Query tiling: pad the token axis so every tile is full (dense vregs,
    # unmasked stores); padded keys are masked inside the kernel.
    tq = min(q_tile, _round_up(N, 8))
    n_pad = _round_up(N, tq)
    if n_pad != N:
        x_bf = jnp.pad(x_bf, ((0, 0), (0, n_pad - N), (0, 0)))
    n_q_tiles = n_pad // tq

    kernel = functools.partial(_fused_mha_kernel, head=head, scale=scale,
                               n_valid=N)

    # Advisory cost estimate for XLA scheduling around the fused call.
    flops = B * (2 * N * dim * 3 * dim          # qkv projection
                 + 4 * N * N * dim              # scores + attn @ v (all heads)
                 + 2 * N * dim * dim)           # output projection
    bytes_accessed = (x_bf.size * 2 + qkv_w.size * 2 + proj_w.size * 2
                      + qkv_b.size * 4 + proj_b.size * 4
                      + B * N * dim * jnp.dtype(out_dtype).itemsize)
    cost = pl.CostEstimate(flops=int(flops),
                           transcendentals=int(B * head * N * N),
                           bytes_accessed=int(bytes_accessed))

    # Explicit VMEM budget: double-buffered inputs/outputs + resident weights
    # + Q/K/V scratch + in-kernel temporaries + headroom.
    weight_bytes = 2 * (qkv_w.size * 2 + proj_w.size * 2
                        + qkv_b.size * 4 + proj_b.size * 4)
    io_bytes = 2 * (n_pad * dim * 2 + tq * dim * jnp.dtype(out_dtype).itemsize)
    scratch_bytes = 3 * n_pad * dim * 2
    temp_bytes = 4 * (n_pad * 3 * dim + 2 * tq * n_pad + 2 * tq * dim)
    vmem_limit = int(min(max(weight_bytes + io_bytes + scratch_bytes
                             + temp_bytes + (4 << 20), 16 << 20), 48 << 20))

    out = pl.pallas_call(
        kernel,
        out_shape=jax.ShapeDtypeStruct((B, n_pad, dim), out_dtype),
        grid=(B, n_q_tiles),
        in_specs=[
            # x: one full (padded) batch row; resident across its query tiles.
            pl.BlockSpec((pl.Squeezed(), n_pad, dim), lambda b, qi: (b, 0, 0)),
            # Weights / biases: constant block index -> stay resident in VMEM.
            pl.BlockSpec((dim, 3 * dim), lambda b, qi: (0, 0)),
            pl.BlockSpec((1, 3 * dim), lambda b, qi: (0, 0)),
            pl.BlockSpec((dim, dim), lambda b, qi: (0, 0)),
            pl.BlockSpec((1, dim), lambda b, qi: (0, 0)),
        ],
        out_specs=pl.BlockSpec((pl.Squeezed(), tq, dim),
                               lambda b, qi: (b, qi, 0)),
        scratch_shapes=[
            pltpu.VMEM((n_pad, dim), jnp.bfloat16),   # pre-scaled Q
            pltpu.VMEM((n_pad, dim), jnp.bfloat16),   # K
            pltpu.VMEM((n_pad, dim), jnp.bfloat16),   # V
        ],
        compiler_params=pltpu.CompilerParams(
            dimension_semantics=("parallel", "arbitrary"),
            vmem_limit_bytes=vmem_limit),
        cost_estimate=cost,
    )(x_bf, qkv_w, qkv_b, proj_w, proj_b)

    return out[:, :N, :] if n_pad != N else out


# ----------------------------- Reference (JAX) ------------------------------ #

def reference_forward(x, params, *, head):
    B, N, dim = x.shape
    head_dim = dim // head
    scale = float(dim / head) ** (-0.5)
    qkv = x.reshape(B * N, dim) @ params["qkv_w"] + params["qkv_b"]
    qkv = qkv.reshape(B, N, 3, head, head_dim).transpose(2, 0, 3, 1, 4)
    q, k, v = qkv[0], qkv[1], qkv[2]
    s = jnp.einsum("bhqd,bhkd->bhqk", q, k) * scale
    p = jax.nn.softmax(s, axis=-1)
    o = jnp.einsum("bhqk,bhkd->bhqd", p, v)
    o = o.transpose(0, 2, 1, 3).reshape(B * N, dim)
    o = o @ params["proj_w"] + params["proj_b"]
    return o.reshape(B, N, dim)


# ---------------------------------- Main ------------------------------------ #

if __name__ == "__main__":
    # Small shapes consistent with the module (dim divisible by head count).
    # N = 12 is deliberately not a multiple of the tile so the token-padding /
    # key-masking path (ViT's 197 -> 256 case) is exercised.
    B, N, dim, head = 2, 12, 32, 4

    key = jax.random.PRNGKey(0)
    kx, kqw, kqb, kpw, kpb = jax.random.split(key, 5)

    x = jax.random.normal(kx, (B, N, dim), dtype=jnp.float32)

    # Deterministic parameter init (nn.Linear shapes: qkv dim->3*dim, proj dim->dim).
    params = {
        "qkv_w": jax.random.normal(kqw, (dim, 3 * dim), dtype=jnp.float32) * 0.02,
        "qkv_b": jax.random.normal(kqb, (3 * dim,), dtype=jnp.float32) * 0.02,
        "proj_w": jax.random.normal(kpw, (dim, dim), dtype=jnp.float32) * 0.02,
        "proj_b": jax.random.normal(kpb, (dim,), dtype=jnp.float32) * 0.02,
    }

    out = multi_head_forward(x, params, head=head)
    out = jax.block_until_ready(out)

    ref = reference_forward(x, params, head=head)
    assert out.shape == (B, N, dim)
    # Tolerance accounts for bf16 MXU operands (f32 accumulation) and the
    # approximate (EUP) reciprocal in the softmax.
    assert jnp.allclose(out, ref, atol=5e-3, rtol=5e-2), "mismatch vs JAX reference"

    print("KERNEL_OK")
</pallas_src>

<mosaic_0001>
module attributes {stable_mosaic.version = 11 : i64} {
  func.func @_fused_mha_kernel(%arg0: i32, %arg1: i32, %arg2: memref<1x16x32xbf16, #tpu.memory_space<vmem>>, %arg3: memref<32x96xbf16, #tpu.memory_space<vmem>>, %arg4: memref<1x96xf32, #tpu.memory_space<vmem>>, %arg5: memref<32x32xbf16, #tpu.memory_space<vmem>>, %arg6: memref<1x32xf32, #tpu.memory_space<vmem>>, %arg7: memref<1x16x32xf32, #tpu.memory_space<vmem>>, %arg8: memref<16x32xbf16, #tpu.memory_space<vmem>>, %arg9: memref<16x32xbf16, #tpu.memory_space<vmem>>, %arg10: memref<16x32xbf16, #tpu.memory_space<vmem>>) attributes {dimension_semantics = [#tpu.dimension_semantics<parallel>, #tpu.dimension_semantics<arbitrary>], iteration_bounds = array<i64: 2, 1>, scalar_prefetch = 0 : i64, scratch_operands = 3 : i64, tpu.core_type = #tpu.core_type<tc>, window_params = [{transform_indices = @transform_0, window_bounds = array<i64: 1, 16, 32>}, {pipeline_mode = #tpu.pipeline_mode<synchronous>, transform_indices = @transform_1, window_bounds = array<i64: 32, 96>}, {pipeline_mode = #tpu.pipeline_mode<synchronous>, transform_indices = @transform_2, window_bounds = array<i64: 1, 96>}, {pipeline_mode = #tpu.pipeline_mode<synchronous>, transform_indices = @transform_3, window_bounds = array<i64: 32, 32>}, {pipeline_mode = #tpu.pipeline_mode<synchronous>, transform_indices = @transform_4, window_bounds = array<i64: 1, 32>}, {transform_indices = @transform_5, window_bounds = array<i64: 1, 16, 32>}]} {
    %c0_i32 = arith.constant 0 : i32
    %0 = arith.cmpi eq, %arg1, %c0_i32 : i32
    %1 = arith.extui %0 : i1 to i32
    %c0_i32_0 = arith.constant 0 : i32
    %2 = arith.cmpi ne, %1, %c0_i32_0 : i32
    scf.if %2 {
      %c0_49 = arith.constant 0 : index
      %c0_50 = arith.constant 0 : index
      %c0_51 = arith.constant 0 : index
      %104 = vector.load %arg2[%c0_49, %c0_50, %c0_51] : memref<1x16x32xbf16, #tpu.memory_space<vmem>>, vector<1x16x32xbf16>
      %105 = vector.shape_cast %104 : vector<1x16x32xbf16> to vector<16x32xbf16>
      %c0_52 = arith.constant 0 : index
      %c0_53 = arith.constant 0 : index
      %106 = vector.load %arg3[%c0_52, %c0_53] : memref<32x96xbf16, #tpu.memory_space<vmem>>, vector<32x96xbf16>
      %cst_54 = arith.constant dense<0.000000e+00> : vector<16x96xf32>
      %107 = tpu.matmul %105, %106, %cst_54 {dimension_numbers = #tpu.dot_dimension_numbers<[1], [0], [0], [1], [0, 0, 1, 1], [], []>} : vector<16x32xbf16>, vector<32x96xbf16>, vector<16x96xf32> -> vector<16x96xf32>
      %c0_55 = arith.constant 0 : index
      %c0_56 = arith.constant 0 : index
      %108 = vector.load %arg4[%c0_55, %c0_56] : memref<1x96xf32, #tpu.memory_space<vmem>>, vector<1x96xf32>
      %109 = vector.broadcast %108 : vector<1x96xf32> to vector<16x96xf32>
      %110 = arith.addf %107, %109 : vector<16x96xf32>
      %111 = vector.extract_strided_slice %110 {offsets = [0, 0], sizes = [16, 32], strides = [1, 1]} : vector<16x96xf32> to vector<16x32xf32>
      %cst_57 = arith.constant 0.353553385 : f32
      %112 = vector.broadcast %cst_57 : f32 to vector<16x32xf32>
      %113 = arith.mulf %111, %112 : vector<16x32xf32>
      %114 = arith.truncf %113 : vector<16x32xf32> to vector<16x32xbf16>
      %c0_58 = arith.constant 0 : index
      %c0_59 = arith.constant 0 : index
      %115 = vector.load %arg8[%c0_58, %c0_59] : memref<16x32xbf16, #tpu.memory_space<vmem>>, vector<16x32xbf16>
      tpu.vector_store %arg8[%c0_58, %c0_59], %114 {strides = array<i32>} : memref<16x32xbf16, #tpu.memory_space<vmem>>, vector<16x32xbf16>,
      %116 = vector.extract_strided_slice %110 {offsets = [0, 32], sizes = [16, 32], strides = [1, 1]} : vector<16x96xf32> to vector<16x32xf32>
      %117 = arith.truncf %116 : vector<16x32xf32> to vector<16x32xbf16>
      %c0_60 = arith.constant 0 : index
      %c0_61 = arith.constant 0 : index
      %118 = vector.load %arg9[%c0_60, %c0_61] : memref<16x32xbf16, #tpu.memory_space<vmem>>, vector<16x32xbf16>
      tpu.vector_store %arg9[%c0_60, %c0_61], %117 {strides = array<i32>} : memref<16x32xbf16, #tpu.memory_space<vmem>>, vector<16x32xbf16>,
      %119 = vector.extract_strided_slice %110 {offsets = [0, 64], sizes = [16, 32], strides = [1, 1]} : vector<16x96xf32> to vector<16x32xf32>
      %120 = arith.truncf %119 : vector<16x32xf32> to vector<16x32xbf16>
      %c0_62 = arith.constant 0 : index
      %c0_63 = arith.constant 0 : index
      %121 = vector.load %arg10[%c0_62, %c0_63] : memref<16x32xbf16, #tpu.memory_space<vmem>>, vector<16x32xbf16>
      tpu.vector_store %arg10[%c0_62, %c0_63], %120 {strides = array<i32>} : memref<16x32xbf16, #tpu.memory_space<vmem>>, vector<16x32xbf16>,
    } else {
    }
    %c16_i32 = arith.constant 16 : i32
    %3 = arith.muli %arg1, %c16_i32 : i32
    %4 = tpu.assume_multiple %3, 16 : i32
    %5 = arith.index_cast %4 : i32 to index
    %c0 = arith.constant 0 : index
    %6 = vector.load %arg8[%5, %c0] : memref<16x32xbf16, #tpu.memory_space<vmem>>, vector<16x32xbf16>
    %7 = tpu.iota {dimensions = array<i32: 1>} : vector<16x16xi32>
    %c12_i32 = arith.constant 12 : i32
    %8 = vector.broadcast %c12_i32 : i32 to vector<16x16xi32>
    %9 = arith.cmpi slt, %7, %8 : vector<16x16xi32>
    %cst = arith.constant 0.000000e+00 : f32
    %cst_1 = arith.constant -1.000000e+30 : f32
    %10 = vector.broadcast %cst : f32 to vector<16x16xf32>
    %11 = vector.broadcast %cst_1 : f32 to vector<16x16xf32>
    %12 = arith.select %9, %10, %11 : vector<16x16xi1>, vector<16x16xf32>
    %cst_2 = arith.constant 0.000000e+00 : f32
    %13 = vector.broadcast %cst_2 : f32 to vector<16x32xf32>
    %14 = vector.extract_strided_slice %6 {offsets = [0, 0], sizes = [16, 8], strides = [1, 1]} : vector<16x32xbf16> to vector<16x8xbf16>
    %c0_3 = arith.constant 0 : index
    %c0_4 = arith.constant 0 : index
    %15 = vector.load %arg9[%c0_3, %c0_4] : memref<16x32xbf16, #tpu.memory_space<vmem>>, vector<16x8xbf16>
    %c0_5 = arith.constant 0 : index
    %c0_6 = arith.constant 0 : index
    %16 = vector.load %arg10[%c0_5, %c0_6] : memref<16x32xbf16, #tpu.memory_space<vmem>>, vector<16x8xbf16>
    %cst_7 = arith.constant dense<0.000000e+00> : vector<16x16xf32>
    %17 = tpu.matmul %14, %15, %cst_7 {dimension_numbers = #tpu.dot_dimension_numbers<[1], [1], [0], [0], [0, 0, 1, 0], [], []>} : vector<16x8xbf16>, vector<16x8xbf16>, vector<16x16xf32> -> vector<16x16xf32>
    %18 = arith.addf %17, %12 : vector<16x16xf32>
    %cst_8 = arith.constant dense<0xFF800000> : vector<16xf32>
    %19 = vector.multi_reduction <maximumf>, %18, %cst_8 [1] : vector<16x16xf32> to vector<16xf32>
    %20 = vector.shape_cast %19 : vector<16xf32> to vector<16x1xf32>
    %21 = vector.broadcast %20 : vector<16x1xf32> to vector<16x16xf32>
    %22 = arith.subf %18, %21 : vector<16x16xf32>
    %23 = math.exp %22 : vector<16x16xf32>
    %cst_9 = arith.constant dense<0.000000e+00> : vector<16xf32>
    %24 = vector.multi_reduction <add>, %23, %cst_9 [1] : vector<16x16xf32> to vector<16xf32>
    %25 = vector.shape_cast %24 : vector<16xf32> to vector<16x1xf32>
    %26 = tpu.reciprocal %25 {approx = true} : vector<16x1xf32> -> vector<16x1xf32>
    %27 = vector.broadcast %26 : vector<16x1xf32> to vector<16x16xf32>
    %28 = arith.mulf %23, %27 : vector<16x16xf32>
    %29 = arith.truncf %28 : vector<16x16xf32> to vector<16x16xbf16>
    %cst_10 = arith.constant dense<0.000000e+00> : vector<16x8xf32>
    %30 = tpu.matmul %29, %16, %cst_10 {dimension_numbers = #tpu.dot_dimension_numbers<[1], [0], [0], [1], [0, 0, 1, 1], [], []>} : vector<16x16xbf16>, vector<16x8xbf16>, vector<16x8xf32> -> vector<16x8xf32>
    %31 = arith.truncf %30 : vector<16x8xf32> to vector<16x8xbf16>
    %c0_11 = arith.constant 0 : index
    %c0_12 = arith.constant 0 : index
    %32 = vector.load %arg5[%c0_11, %c0_12] : memref<32x32xbf16, #tpu.memory_space<vmem>>, vector<8x32xbf16>
    %cst_13 = arith.constant dense<0.000000e+00> : vector<16x32xf32>
    %33 = tpu.matmul %31, %32, %cst_13 {dimension_numbers = #tpu.dot_dimension_numbers<[1], [0], [0], [1], [0, 0, 1, 1], [], []>} : vector<16x8xbf16>, vector<8x32xbf16>, vector<16x32xf32> -> vector<16x32xf32>
    %34 = arith.addf %13, %33 : vector<16x32xf32>
    %35 = vector.extract_strided_slice %6 {offsets = [0, 8], sizes = [16, 8], strides = [1, 1]} : vector<16x32xbf16> to vector<16x8xbf16>
    %c0_14 = arith.constant 0 : index
    %c8 = arith.constant 8 : index
    %36 = vector.load %arg9[%c0_14, %c8] : memref<16x32xbf16, #tpu.memory_space<vmem>>, vector<16x8xbf16>
    %c0_15 = arith.constant 0 : index
    %c8_16 = arith.constant 8 : index
    %37 = vector.load %arg10[%c0_15, %c8_16] : memref<16x32xbf16, #tpu.memory_space<vmem>>, vector<16x8xbf16>
    %cst_17 = arith.constant dense<0.000000e+00> : vector<16x16xf32>
    %38 = tpu.matmul %35, %36, %cst_17 {dimension_numbers = #tpu.dot_dimension_numbers<[1], [1], [0], [0], [0, 0, 1, 0], [], []>} : vector<16x8xbf16>, vector<16x8xbf16>, vector<16x16xf32> -> vector<16x16xf32>
    %39 = arith.addf %38, %12 : vector<16x16xf32>
    %cst_18 = arith.constant dense<0xFF800000> : vector<16xf32>
    %40 = vector.multi_reduction <maximumf>, %39, %cst_18 [1] : vector<16x16xf32> to vector<16xf32>
    %41 = vector.shape_cast %40 : vector<16xf32> to vector<16x1xf32>
    %42 = vector.broadcast %41 : vector<16x1xf32> to vector<16x16xf32>
    %43 = arith.subf %39, %42 : vector<16x16xf32>
    %44 = math.exp %43 : vector<16x16xf32>
    %cst_19 = arith.constant dense<0.000000e+00> : vector<16xf32>
    %45 = vector.multi_reduction <add>, %44, %cst_19 [1] : vector<16x16xf32> to vector<16xf32>
    %46 = vector.shape_cast %45 : vector<16xf32> to vector<16x1xf32>
    %47 = tpu.reciprocal %46 {approx = true} : vector<16x1xf32> -> vector<16x1xf32>
    %48 = vector.broadcast %47 : vector<16x1xf32> to vector<16x16xf32>
    %49 = arith.mulf %44, %48 : vector<16x16xf32>
    %50 = arith.truncf %49 : vector<16x16xf32> to vector<16x16xbf16>
    %cst_20 = arith.constant dense<0.000000e+00> : vector<16x8xf32>
    %51 = tpu.matmul %50, %37, %cst_20 {dimension_numbers = #tpu.dot_dimension_numbers<[1], [0], [0], [1], [0, 0, 1, 1], [], []>} : vector<16x16xbf16>, vector<16x8xbf16>, vector<16x8xf32> -> vector<16x8xf32>
    %52 = arith.truncf %51 : vector<16x8xf32> to vector<16x8xbf16>
    %c8_21 = arith.constant 8 : index
    %c0_22 = arith.constant 0 : index
    %53 = vector.load %arg5[%c8_21, %c0_22] : memref<32x32xbf16, #tpu.memory_space<vmem>>, vector<8x32xbf16>
    %cst_23 = arith.constant dense<0.000000e+00> : vector<16x32xf32>
    %54 = tpu.matmul %52, %53, %cst_23 {dimension_numbers = #tpu.dot_dimension_numbers<[1], [0], [0], [1], [0, 0, 1, 1], [], []>} : vector<16x8xbf16>, vector<8x32xbf16>, vector<16x32xf32> -> vector<16x32xf32>
    %55 = arith.addf %34, %54 : vector<16x32xf32>
    %56 = vector.extract_strided_slice %6 {offsets = [0, 16], sizes = [16, 8], strides = [1, 1]} : vector<16x32xbf16> to vector<16x8xbf16>
    %c0_24 = arith.constant 0 : index
    %c16 = arith.constant 16 : index
    %57 = vector.load %arg9[%c0_24, %c16] : memref<16x32xbf16, #tpu.memory_space<vmem>>, vector<16x8xbf16>
    %c0_25 = arith.constant 0 : index
    %c16_26 = arith.constant 16 : index
    %58 = vector.load %arg10[%c0_25, %c16_26] : memref<16x32xbf16, #tpu.memory_space<vmem>>, vector<16x8xbf16>
    %cst_27 = arith.constant dense<0.000000e+00> : vector<16x16xf32>
    %59 = tpu.matmul %56, %57, %cst_27 {dimension_numbers = #tpu.dot_dimension_numbers<[1], [1], [0], [0], [0, 0, 1, 0], [], []>} : vector<16x8xbf16>, vector<16x8xbf16>, vector<16x16xf32> -> vector<16x16xf32>
    %60 = arith.addf %59, %12 : vector<16x16xf32>
    %cst_28 = arith.constant dense<0xFF800000> : vector<16xf32>
    %61 = vector.multi_reduction <maximumf>, %60, %cst_28 [1] : vector<16x16xf32> to vector<16xf32>
    %62 = vector.shape_cast %61 : vector<16xf32> to vector<16x1xf32>
    %63 = vector.broadcast %62 : vector<16x1xf32> to vector<16x16xf32>
    %64 = arith.subf %60, %63 : vector<16x16xf32>
    %65 = math.exp %64 : vector<16x16xf32>
    %cst_29 = arith.constant dense<0.000000e+00> : vector<16xf32>
    %66 = vector.multi_reduction <add>, %65, %cst_29 [1] : vector<16x16xf32> to vector<16xf32>
    %67 = vector.shape_cast %66 : vector<16xf32> to vector<16x1xf32>
    %68 = tpu.reciprocal %67 {approx = true} : vector<16x1xf32> -> vector<16x1xf32>
    %69 = vector.broadcast %68 : vector<16x1xf32> to vector<16x16xf32>
    %70 = arith.mulf %65, %69 : vector<16x16xf32>
    %71 = arith.truncf %70 : vector<16x16xf32> to vector<16x16xbf16>
    %cst_30 = arith.constant dense<0.000000e+00> : vector<16x8xf32>
    %72 = tpu.matmul %71, %58, %cst_30 {dimension_numbers = #tpu.dot_dimension_numbers<[1], [0], [0], [1], [0, 0, 1, 1], [], []>} : vector<16x16xbf16>, vector<16x8xbf16>, vector<16x8xf32> -> vector<16x8xf32>
    %73 = arith.truncf %72 : vector<16x8xf32> to vector<16x8xbf16>
    %c16_31 = arith.constant 16 : index
    %c0_32 = arith.constant 0 : index
    %74 = vector.load %arg5[%c16_31, %c0_32] : memref<32x32xbf16, #tpu.memory_space<vmem>>, vector<8x32xbf16>
    %cst_33 = arith.constant dense<0.000000e+00> : vector<16x32xf32>
    %75 = tpu.matmul %73, %74, %cst_33 {dimension_numbers = #tpu.dot_dimension_numbers<[1], [0], [0], [1], [0, 0, 1, 1], [], []>} : vector<16x8xbf16>, vector<8x32xbf16>, vector<16x32xf32> -> vector<16x32xf32>
    %76 = arith.addf %55, %75 : vector<16x32xf32>
    %77 = vector.extract_strided_slice %6 {offsets = [0, 24], sizes = [16, 8], strides = [1, 1]} : vector<16x32xbf16> to vector<16x8xbf16>
    %c0_34 = arith.constant 0 : index
    %c24 = arith.constant 24 : index
    %78 = vector.load %arg9[%c0_34, %c24] : memref<16x32xbf16, #tpu.memory_space<vmem>>, vector<16x8xbf16>
    %c0_35 = arith.constant 0 : index
    %c24_36 = arith.constant 24 : index
    %79 = vector.load %arg10[%c0_35, %c24_36] : memref<16x32xbf16, #tpu.memory_space<vmem>>, vector<16x8xbf16>
    %cst_37 = arith.constant dense<0.000000e+00> : vector<16x16xf32>
    %80 = tpu.matmul %77, %78, %cst_37 {dimension_numbers = #tpu.dot_dimension_numbers<[1], [1], [0], [0], [0, 0, 1, 0], [], []>} : vector<16x8xbf16>, vector<16x8xbf16>, vector<16x16xf32> -> vector<16x16xf32>
    %81 = arith.addf %80, %12 : vector<16x16xf32>
    %cst_38 = arith.constant dense<0xFF800000> : vector<16xf32>
    %82 = vector.multi_reduction <maximumf>, %81, %cst_38 [1] : vector<16x16xf32> to vector<16xf32>
    %83 = vector.shape_cast %82 : vector<16xf32> to vector<16x1xf32>
    %84 = vector.broadcast %83 : vector<16x1xf32> to vector<16x16xf32>
    %85 = arith.subf %81, %84 : vector<16x16xf32>
    %86 = math.exp %85 : vector<16x16xf32>
    %cst_39 = arith.constant dense<0.000000e+00> : vector<16xf32>
    %87 = vector.multi_reduction <add>, %86, %cst_39 [1] : vector<16x16xf32> to vector<16xf32>
    %88 = vector.shape_cast %87 : vector<16xf32> to vector<16x1xf32>
    %89 = tpu.reciprocal %88 {approx = true} : vector<16x1xf32> -> vector<16x1xf32>
    %90 = vector.broadcast %89 : vector<16x1xf32> to vector<16x16xf32>
    %91 = arith.mulf %86, %90 : vector<16x16xf32>
    %92 = arith.truncf %91 : vector<16x16xf32> to vector<16x16xbf16>
    %cst_40 = arith.constant dense<0.000000e+00> : vector<16x8xf32>
    %93 = tpu.matmul %92, %79, %cst_40 {dimension_numbers = #tpu.dot_dimension_numbers<[1], [0], [0], [1], [0, 0, 1, 1], [], []>} : vector<16x16xbf16>, vector<16x8xbf16>, vector<16x8xf32> -> vector<16x8xf32>
    %94 = arith.truncf %93 : vector<16x8xf32> to vector<16x8xbf16>
    %c24_41 = arith.constant 24 : index
    %c0_42 = arith.constant 0 : index
    %95 = vector.load %arg5[%c24_41, %c0_42] : memref<32x32xbf16, #tpu.memory_space<vmem>>, vector<8x32xbf16>
    %cst_43 = arith.constant dense<0.000000e+00> : vector<16x32xf32>
    %96 = tpu.matmul %94, %95, %cst_43 {dimension_numbers = #tpu.dot_dimension_numbers<[1], [0], [0], [1], [0, 0, 1, 1], [], []>} : vector<16x8xbf16>, vector<8x32xbf16>, vector<16x32xf32> -> vector<16x32xf32>
    %97 = arith.addf %76, %96 : vector<16x32xf32>
    %c0_44 = arith.constant 0 : index
    %c0_45 = arith.constant 0 : index
    %98 = vector.load %arg6[%c0_44, %c0_45] : memref<1x32xf32, #tpu.memory_space<vmem>>, vector<1x32xf32>
    %99 = vector.broadcast %98 : vector<1x32xf32> to vector<16x32xf32>
    %100 = arith.addf %97, %99 : vector<16x32xf32>
    %c0_46 = arith.constant 0 : index
    %c0_47 = arith.constant 0 : index
    %c0_48 = arith.constant 0 : index
    %101 = vector.load %arg7[%c0_46, %c0_47, %c0_48] : memref<1x16x32xf32, #tpu.memory_space<vmem>>, vector<1x16x32xf32>
    %102 = vector.shape_cast %101 : vector<1x16x32xf32> to vector<16x32xf32>
    %103 = vector.shape_cast %100 : vector<16x32xf32> to vector<1x16x32xf32>
    tpu.vector_store %arg7[%c0_46, %c0_47, %c0_48], %103 {strides = array<i32>} : memref<1x16x32xf32, #tpu.memory_space<vmem>>, vector<1x16x32xf32>,
    return
  }
  func.func @transform_0(%arg0: i32, %arg1: i32) -> (i32, i32, i32) {
    %c0_i32 = arith.constant 0 : i32
    %c0_i32_0 = arith.constant 0 : i32
    %c0_i32_1 = arith.constant 0 : i32
    return %arg0, %c0_i32, %c0_i32_0 : i32, i32, i32
  }
  func.func @transform_1(%arg0: i32, %arg1: i32) -> (i32, i32) {
    %c0_i32 = arith.constant 0 : i32
    %c0_i32_0 = arith.constant 0 : i32
    %c0_i32_1 = arith.constant 0 : i32
    return %c0_i32, %c0_i32_0 : i32, i32
  }
  func.func @transform_2(%arg0: i32, %arg1: i32) -> (i32, i32) {
    %c0_i32 = arith.constant 0 : i32
    %c0_i32_0 = arith.constant 0 : i32
    %c0_i32_1 = arith.constant 0 : i32
    return %c0_i32, %c0_i32_0 : i32, i32
  }
  func.func @transform_3(%arg0: i32, %arg1: i32) -> (i32, i32) {
    %c0_i32 = arith.constant 0 : i32
    %c0_i32_0 = arith.constant 0 : i32
    %c0_i32_1 = arith.constant 0 : i32
    return %c0_i32, %c0_i32_0 : i32, i32
  }
  func.func @transform_4(%arg0: i32, %arg1: i32) -> (i32, i32) {
    %c0_i32 = arith.constant 0 : i32
    %c0_i32_0 = arith.constant 0 : i32
    %c0_i32_1 = arith.constant 0 : i32
    return %c0_i32, %c0_i32_0 : i32, i32
  }
  func.func @transform_5(%arg0: i32, %arg1: i32) -> (i32, i32, i32) {
    %c0_i32 = arith.constant 0 : i32
    %c0_i32_0 = arith.constant 0 : i32
    return %arg0, %arg1, %c0_i32 : i32, i32, i32
  }
}

</mosaic_0001>

<llo_original>
// kernel: tpu_custom_call.1
$region0: #{tpu_custom_call.1}
  #allocation0 [shape = 'u32[]', space=smem, size = 0x4, offset = 0x4, fixed_abs, tag = 'smem constant byte address 0x4 - core index']
  #allocation1 [shape = 'u32[72,128]{1,0:T(1,128)}', space=vmem, size = 0x9000, scoped, tag = 'internal scratch']
  #allocation2 [shape = 'bf16[16,32]{1,0:T(8,128)(2,1)}', space=vmem, size = 0x1000, scoped, tag = 'scratch operand']
  #allocation3 [shape = 'bf16[16,32]{1,0:T(8,128)(2,1)}', space=vmem, size = 0x1000, scoped, tag = 'scratch operand']
  #allocation4 [shape = 'bf16[16,32]{1,0:T(8,128)(2,1)}', space=vmem, size = 0x1000, scoped, tag = 'scratch operand']
  %s0 = inlined_call_operand.hbm [shape: bf16[2,16,32], index: 0, kind: input, shape index: {}]
  %s1 = inlined_call_operand.hbm [shape: bf16[32,96], index: 1, kind: input, shape index: {}]
  %s2 = inlined_call_operand.vmem [shape: f32[1,96], index: 2, kind: input, shape index: {}]
  %s3 = inlined_call_operand.hbm [shape: bf16[32,32], index: 3, kind: input, shape index: {}]
  %s4 = inlined_call_operand.vmem [shape: f32[1,32], index: 4, kind: input, shape index: {}]
  %s5 = inlined_call_operand.hbm [shape: f32[2,16,32], index: 5, kind: output, shape index: {}]
  %s6 = sld [smem:[#allocation0]]
  $region69: #{tpu_custom_call.1} parent=0
    _
  %s8 = ssub.s32 1, %s6
  %s9 = scalar_select 0, %s8, %s6
  $region1: #{tpu_custom_call.1} parent=0
    #allocation5 [shape = 'u8[8192]{0}', space=vmem, size = 0x2000, scoped, tag = 'input window, operand 0']
    #allocation6 [shape = 's32[2]{0}', space=sflag, size = 0x8, scoped, tag = 'scoped memory for tpu_custom_call.1']
    #allocation7 [shape = 's32[2]{0}', space=sflag, size = 0x8, scoped, tag = 'scoped memory for tpu_custom_call.1']
    #allocation8 [shape = 'u8[8192]{0}', space=vmem, size = 0x2000, scoped, tag = 'input window, operand 1, single buffered']
    #allocation9 [shape = 's32[1]{0}', space=sflag, size = 0x4, scoped, tag = 'scoped memory for tpu_custom_call.1']
    #allocation10 [shape = 'u8[8192]{0}', space=vmem, size = 0x2000, scoped, tag = 'input window, operand 3, single buffered']
    #allocation11 [shape = 'u8[16384]{0}', space=vmem, size = 0x4000, scoped, tag = 'output window, operand 0']
    %10 = vsyncpa [#allocation6], 0
    %s11 = scalar_lea.sflag [#allocation6], 1
    %12 = vsyncpa %s11, 0
    %13 = vsyncpa [#allocation9], 0
    %14 = vsyncpa [#allocation7], 0
    %s15 = scalar_lea.sflag [#allocation7], 1
    %16 = vsyncpa %s15, 0
    loop: start=0, step=1, limit=4
    $region2: #{tpu_custom_call.1} parent=1 // loop_pre_header
      _
    $region3: #{tpu_custom_call.1} parent=1 // loop_header
      %s18 = sphi 0, %s22
      %p19 = scmp.ge.s32.totalorder %s18, 4
      %s25 = sphi 0, %s37
      %s26 = sphi 0, %s33
      %s27 = sphi 0, %s25
      %s28 = sphi 0, %s26
      %s29 = sphi 0, %s27
      %s30 = sphi 0, %s28
      %s40 = sphi 0, %s42
      %s43 = sphi 0, %s40
      %s44 = sphi 0, %s43
      %s60 = sphi 0, %s44
      %s64 = sphi 0, %s64
      %s66 = sphi 0, %s64
      %s67 = sphi 0, %s66
      %s81 = sphi 0, %s67
      %s85 = sphi 0, %s85
      %s87 = sphi 0, %s85
      %s88 = sphi 0, %s87
      %s102 = sphi 0, %s88
      %s106 = sphi 0, %s106
      %s108 = sphi 0, %s106
      %s109 = sphi 0, %s108
      %s123 = sphi 0, %s109
      %s127 = sphi 0, %s127
      %s129 = sphi 0, %s127
      %s130 = sphi 0, %s129
      %s144 = sphi 0, %s130
      %s152 = sphi 0, %s154
      %s155 = sphi 0, %s152
      %s156 = sphi 0, %s155
      %s172 = sphi 0, %s156
    $region4: #{tpu_custom_call.1} parent=1 // loop_header_branch
      %21 = sbr.rel (%p19) target = $region8
    $region5: #{tpu_custom_call.1} parent=1 // loop_body
      %s23 = ssub.s32 %s18, 1
      %s24 = ssub.s32 %s18, 2
      %s31 = sadd.s32 1, %s26
      %p32 = scmp.ge.s32.totalorder %s31, 1
      %s33 = scalar_select %p32, 0, %s31
      %s34 = sadd.s32 1, %s25
      %s35 = scalar_select %p32, %s34, %s25
      %p36 = scmp.ge.s32.totalorder %s35, 2
      %s37 = scalar_select %p36, 0, %s35
      %s38 = ssub.s32 %s25, %s37
      %p39 = scmp.eq.s32.totalorder %s38, 0
      %s41 = sadd.s32 %s40, 1
      %s42 = scalar_select %p39, %s40, %s41
      %p45 = pneg %p39
      %p46 = scmp.eq.s32.totalorder %s18, 1
      %p47 = por %p45, %p46
      %p48 = scmp.ne.s32.totalorder %s40, %s43
      %p49 = scmp.eq.s32.totalorder %s18, 0
      %p50 = por %p48, %p49
      %p51 = scmp.ne.s32.totalorder %s40, %s43
      %p52 = scmp.eq.s32.totalorder %s23, 1
      %p53 = por %p51, %p52
      %p54 = scmp.ne.s32.totalorder %s43, %s44
      %p55 = scmp.eq.s32.totalorder %s23, 0
      %p56 = por %p54, %p55
      %p57 = scmp.ne.s32.totalorder %s43, %s44
      %p58 = scmp.eq.s32.totalorder %s24, 1
      %p59 = por %p57, %p58
      %p61 = scmp.ne.s32.totalorder %s44, %s60
      %p62 = scmp.eq.s32.totalorder %s24, 0
      %p63 = por %p61, %p62
      %s65 = sadd.s32 %s64, 1
      %p68 = scmp.eq.s32.totalorder %s18, 1
      %p69 = scmp.ne.s32.totalorder %s64, %s66
      %p70 = scmp.eq.s32.totalorder %s18, 0
      %p71 = por %p69, %p70
      %p72 = scmp.ne.s32.totalorder %s64, %s66
      %p73 = scmp.eq.s32.totalorder %s23, 1
      %p74 = por %p72, %p73
      %p75 = scmp.ne.s32.totalorder %s66, %s67
      %p76 = scmp.eq.s32.totalorder %s23, 0
      %p77 = por %p75, %p76
      %p78 = scmp.ne.s32.totalorder %s66, %s67
      %p79 = scmp.eq.s32.totalorder %s24, 1
      %p80 = por %p78, %p79
      %p82 = scmp.ne.s32.totalorder %s67, %s81
      %p83 = scmp.eq.s32.totalorder %s24, 0
      %p84 = por %p82, %p83
      %s86 = sadd.s32 %s85, 1
      %p89 = scmp.eq.s32.totalorder %s18, 1
      %p90 = scmp.ne.s32.totalorder %s85, %s87
      %p91 = scmp.eq.s32.totalorder %s18, 0
      %p92 = por %p90, %p91
      %p93 = scmp.ne.s32.totalorder %s85, %s87
      %p94 = scmp.eq.s32.totalorder %s23, 1
      %p95 = por %p93, %p94
      %p96 = scmp.ne.s32.totalorder %s87, %s88
      %p97 = scmp.eq.s32.totalorder %s23, 0
      %p98 = por %p96, %p97
      %p99 = scmp.ne.s32.totalorder %s87, %s88
      %p100 = scmp.eq.s32.totalorder %s24, 1
      %p101 = por %p99, %p100
      %p103 = scmp.ne.s32.totalorder %s88, %s102
      %p104 = scmp.eq.s32.totalorder %s24, 0
      %p105 = por %p103, %p104
      %s107 = sadd.s32 %s106, 1
      %p110 = scmp.eq.s32.totalorder %s18, 1
      %p111 = scmp.ne.s32.totalorder %s106, %s108
      %p112 = scmp.eq.s32.totalorder %s18, 0
      %p113 = por %p111, %p112
      %p114 = scmp.ne.s32.totalorder %s106, %s108
      %p115 = scmp.eq.s32.totalorder %s23, 1
      %p116 = por %p114, %p115
      %p117 = scmp.ne.s32.totalorder %s108, %s109
      %p118 = scmp.eq.s32.totalorder %s23, 0
      %p119 = por %p117, %p118
      %p120 = scmp.ne.s32.totalorder %s108, %s109
      %p121 = scmp.eq.s32.totalorder %s24, 1
      %p122 = por %p120, %p121
      %p124 = scmp.ne.s32.totalorder %s109, %s123
      %p125 = scmp.eq.s32.totalorder %s24, 0
      %p126 = por %p124, %p125
      %s128 = sadd.s32 %s127, 1
      %p131 = scmp.eq.s32.totalorder %s18, 1
      %p132 = scmp.ne.s32.totalorder %s127, %s129
      %p133 = scmp.eq.s32.totalorder %s18, 0
      %p134 = por %p132, %p133
      %p135 = scmp.ne.s32.totalorder %s127, %s129
      %p136 = scmp.eq.s32.totalorder %s23, 1
      %p137 = por %p135, %p136
      %p138 = scmp.ne.s32.totalorder %s129, %s130
      %p139 = scmp.eq.s32.totalorder %s23, 0
      %p140 = por %p138, %p139
      %p141 = scmp.ne.s32.totalorder %s129, %s130
      %p142 = scmp.eq.s32.totalorder %s24, 1
      %p143 = por %p141, %p142
      %p145 = scmp.ne.s32.totalorder %s130, %s144
      %p146 = scmp.eq.s32.totalorder %s24, 0
      %p147 = por %p145, %p146
      %s148 = ssub.s32 %s25, %s37
      %s149 = ssub.s32 %s26, %s33
      %s150 = sor.u32 %s148, %s149
      %p151 = scmp.eq.s32.totalorder %s150, 0
      %s153 = sadd.s32 %s152, 1
      %s154 = scalar_select %p151, %s152, %s153
      %p157 = pneg %p151
      %p158 = scmp.eq.s32.totalorder %s18, 1
      %p159 = por %p157, %p158
      %p160 = scmp.ne.s32.totalorder %s152, %s155
      %p161 = scmp.eq.s32.totalorder %s18, 0
      %p162 = por %p160, %p161
      %p163 = scmp.ne.s32.totalorder %s152, %s155
      %p164 = scmp.eq.s32.totalorder %s23, 1
      %p165 = por %p163, %p164
      %p166 = scmp.ne.s32.totalorder %s155, %s156
      %p167 = scmp.eq.s32.totalorder %s23, 0
      %p168 = por %p166, %p167
      %p169 = scmp.ne.s32.totalorder %s155, %s156
      %p170 = scmp.eq.s32.totalorder %s24, 1
      %p171 = por %p169, %p170
      %p173 = scmp.ne.s32.totalorder %s156, %s172
      %p174 = scmp.eq.s32.totalorder %s24, 0
      %p175 = por %p173, %p174
      %p176 = scmp.le.s32.totalorder 1, %s18
      %p177 = scmp.lt.s32.totalorder %s18, 3
      %p178 = pnand %p176, %p177
      %p179 = pneg %p178
      // Predicated region
      $region9: #{tpu_custom_call.1} parent=5 // pred_check
        _
      $region10: #{tpu_custom_call.1} parent=5 // pred_check_branch
        %181 = sbr.rel (%p178) target = $region12
      $region11: #{tpu_custom_call.1} parent=5 // pred_region
        %s182 = ssub.s32 %s18, 1
        // Predicated region
        $region13: #{tpu_custom_call.1} parent=11 // pred_check
          %p183 = pneg %p77
        $region14: #{tpu_custom_call.1} parent=11 // pred_check_branch
          %185 = sbr.rel (%p183) target = $region16
        $region15: #{tpu_custom_call.1} parent=11 // pred_region
          %187 = vsyncadd [#allocation9], 0
          %s188 = sshll.u32 %s1, 4
          %s189 = int_to_ptr.hbm [resolvable:$true] %s188
          %s190 = sshll.u32 [#allocation8], 4
          %s191 = int_to_ptr.vmem [resolvable:$true] %s190
          %196 = dma.hbm_to_vmem [thread:$0]  %s189, 256, %s191, [#allocation9], 64, 64, 4
        $region16: #{tpu_custom_call.1} parent=11 // pred_fallthru
          _
        // Predicated region
        $region17: #{tpu_custom_call.1} parent=11 // pred_check
          %p197 = pneg %p98
        $region18: #{tpu_custom_call.1} parent=11 // pred_check_branch
          %199 = sbr.rel (%p197) target = $region20
        $region19: #{tpu_custom_call.1} parent=11 // pred_region
          _
        $region20: #{tpu_custom_call.1} parent=11 // pred_fallthru
          _
        // Predicated region
        $region21: #{tpu_custom_call.1} parent=11 // pred_check
          %p200 = pneg %p119
        $region22: #{tpu_custom_call.1} parent=11 // pred_check_branch
          %202 = sbr.rel (%p200) target = $region24
        $region23: #{tpu_custom_call.1} parent=11 // pred_region
          %204 = vsyncadd [#allocation9], 0
          %s205 = sshll.u32 %s3, 4
          %s206 = int_to_ptr.hbm [resolvable:$true] %s205
          %s207 = sshll.u32 [#allocation10], 4
          %s208 = int_to_ptr.vmem [resolvable:$true] %s207
          %213 = dma.hbm_to_vmem [thread:$0]  %s206, 256, %s208, [#allocation9], 64, 64, 4
        $region24: #{tpu_custom_call.1} parent=11 // pred_fallthru
          _
        // Predicated region
        $region25: #{tpu_custom_call.1} parent=11 // pred_check
          %p214 = pneg %p140
        $region26: #{tpu_custom_call.1} parent=11 // pred_check_branch
          %216 = sbr.rel (%p214) target = $region28
        $region27: #{tpu_custom_call.1} parent=11 // pred_region
          _
        $region28: #{tpu_custom_call.1} parent=11 // pred_fallthru
          _
      $region12: #{tpu_custom_call.1} parent=5 // pred_fallthru
        _
      %p217 = scmp.lt.s32.totalorder %s18, 2
      // Predicated region
      $region29: #{tpu_custom_call.1} parent=5 // pred_check
        %p218 = pneg %p217
      $region30: #{tpu_custom_call.1} parent=5 // pred_check_branch
        %220 = sbr.rel (%p218) target = $region32
      $region31: #{tpu_custom_call.1} parent=5 // pred_region
        // Predicated region
        $region33: #{tpu_custom_call.1} parent=31 // pred_check
          %p221 = pneg %p50
        $region34: #{tpu_custom_call.1} parent=31 // pred_check_branch
          %223 = sbr.rel (%p221) target = $region36
        $region35: #{tpu_custom_call.1} parent=31 // pred_region
          %s224 = sand.u32 %s40, 1
          %s225 = scalar_lea.sflag [#allocation6], %s224
          %s226 = sand.u32 %s40, 1
          %s227 = smul.addr %s226, 8
          %s228 = scalar_lea.vmem [#allocation5], %s227
          %230 = vsyncadd %s225, 0
          %s231 = smul.addr %s25, 2
          %s232 = smul.addr %s231, 4
          %s233 = scalar_lea.hbm %s0, %s232
          %s234 = sshll.u32 %s233, 4
          %s235 = int_to_ptr.hbm [resolvable:$true] %s234
          %s236 = sshll.u32 %s228, 4
          %s237 = int_to_ptr.vmem [resolvable:$true] %s236
          %242 = dma.hbm_to_vmem [thread:$0]  %s235, 128, %s237, %s225, 64, 64, 4
        $region36: #{tpu_custom_call.1} parent=31 // pred_fallthru
          _
      $region32: #{tpu_custom_call.1} parent=5 // pred_fallthru
        _
      %p243 = scmp.le.s32.totalorder 1, %s18
      %p244 = scmp.lt.s32.totalorder %s18, 3
      %p245 = pnand %p243, %p244
      %p246 = pneg %p245
      // Predicated region
      $region37: #{tpu_custom_call.1} parent=5 // pred_check
        _
      $region38: #{tpu_custom_call.1} parent=5 // pred_check_branch
        %248 = sbr.rel (%p245) target = $region40
      $region39: #{tpu_custom_call.1} parent=5 // pred_region
        %s249 = ssub.s32 %s18, 1
        %s250 = sand.u32 %s43, 1
        %s251 = scalar_lea.sflag [#allocation6], %s250
        %s252 = sand.u32 %s43, 1
        %s253 = smul.addr %s252, 8
        %s254 = scalar_lea.vmem [#allocation5], %s253
        // Predicated region
        $region41: #{tpu_custom_call.1} parent=39 // pred_check
          %p255 = pneg %p56
        $region42: #{tpu_custom_call.1} parent=39 // pred_check_branch
          %257 = sbr.rel (%p255) target = $region44
        $region43: #{tpu_custom_call.1} parent=39 // pred_region
          %259 = dma.done %s251, 128
        $region44: #{tpu_custom_call.1} parent=39 // pred_fallthru
          _
        // Predicated region
        $region45: #{tpu_custom_call.1} parent=39 // pred_check
          %p260 = pneg %p77
        $region46: #{tpu_custom_call.1} parent=39 // pred_check_branch
          %262 = sbr.rel (%p260) target = $region48
        $region47: #{tpu_custom_call.1} parent=39 // pred_region
          %264 = dma.done [#allocation9], 256
        $region48: #{tpu_custom_call.1} parent=39 // pred_fallthru
          _
        // Predicated region
        $region49: #{tpu_custom_call.1} parent=39 // pred_check
          %p265 = pneg %p119
        $region50: #{tpu_custom_call.1} parent=39 // pred_check_branch
          %267 = sbr.rel (%p265) target = $region52
        $region51: #{tpu_custom_call.1} parent=39 // pred_region
          %269 = dma.done [#allocation9], 256
        $region52: #{tpu_custom_call.1} parent=39 // pred_fallthru
          _
        %s270 = sand.u32 %s43, 1
        %s271 = scalar_lea.sflag [#allocation6], %s270
        %s272 = sand.u32 %s43, 1
        %s273 = smul.addr %s272, 8
        %s274 = scalar_lea.vmem [#allocation5], %s273
        %p275 = pneg %p56
        %p276 = pneg %p53
        %p277 = pneg %p77
        %p278 = pneg %p74
        %p279 = pneg %p98
        %p280 = pneg %p95
        %p281 = pneg %p119
        %p282 = pneg %p116
        %p283 = pneg %p140
        %p284 = pneg %p137
        %p285 = pneg %p168
        %p286 = pneg %p165
        %s287 = sand.u32 %s155, 1
        %s288 = scalar_lea.sflag [#allocation7], %s287
        %s289 = sand.u32 %s155, 1
        %s290 = smul.addr %s289, 16
        %s291 = scalar_lea.vmem [#allocation11], %s290
        %s292 = smul.u32 2, %s28
        %p294 = scmp.eq.s32.totalorder %s28, 0
        // Predicated region
        $region53: #{tpu_custom_call.1} parent=39 // pred_check
          %p295 = pneg %p294
        $region54: #{tpu_custom_call.1} parent=39 // pred_check_branch
          %297 = sbr.rel (%p295) target = $region56
        $region55: #{tpu_custom_call.1} parent=39 // pred_region
          %v298 = vld [vmem:[%s254] sm:$0xf]
          %v299 = vld [vmem:[%s254 + $0x4] sm:$0xf]
          %v300 = vld [vmem:[#allocation8] sm:$0xf]
          %v301 = vld [vmem:[#allocation8 + $0x4] sm:$0xf]
          %v302 = vld [vmem:[#allocation8 + $0x8] sm:$0xf]
          %v303 = vld [vmem:[#allocation8 + $0xc] sm:$0xf]
          %v304 = vld [vmem:[%s2] sm:$0x1]
          %v306 = vperm.slane %v304, 0
          %v310 = vunpack.c.l.b16 %v298
          %v311 = vunpack.c.l.b16 %v299
          %v312 = vpack.c.b16 %v311, %v310
          %v317 = vunpack.c.l.b16 %v300
          %v318 = vunpack.c.l.b16 %v301
          %v319 = vunpack.c.l.b16 %v302
          %v320 = vunpack.c.l.b16 %v303
          %v321 = vpack.c.b16 %v318, %v317
          %v322 = vpack.c.b16 %v320, %v319
          %vm325 = vcmask 261120
          %v327 = vsel %vm325, %v312, 0
          %329 = vmatpush.bf16.msra.mxu0 0
          %330 = vmatpush.bf16.msra.mxu0 0
          %331 = vmatpush.bf16.msra.mxu0 0
          %332 = vmatpush.bf16.msra.mxu0 0
          %333 = vmatpush.bf16.msra.mxu0 0
          %334 = vmatpush.bf16.msra.mxu0 0
          %335 = vmatpush.bf16.msra.mxu0 %v322
          %336 = vmatpush.bf16.msra.mxu0 %v321
          %337 = vmatmul.bf16.gmra.mxu0 %v327
          %v338 = vpop.f32.mrf.mxu0
          %v339 = vadd.f32 %v306, %v338
          %v340 = vpop.f32.mrf.mxu0
          %v341 = vadd.f32 %v306, %v340
          %342 = vdwg.mxu0
          %v343 = vmul.f32 %v339, 0.35355338
          %v344 = vmul.f32 %v341, 0.35355338
          %v345 = vpack.c.bf16 %v343, %v343
          %v346 = vpack.c.bf16 %v344, %v344
          %vm347 = vcmask 257024
          %348 = vst.msk [vmem:[#allocation2] sm:$0xf] %vm347, %v345
          %349 = vst.msk [vmem:[#allocation2 + $0x4] sm:$0xf] %vm347, %v346
          %v350 = vpack.c.bf16 %v339, %v339
          %v351 = vpack.c.bf16 %v341, %v341
          %354 = vrot.lane.b32.xlu0 %v350, 96
          %v355 = vpop.permute.xlu0 %354
          %356 = vrot.lane.b32.xlu0 %v351, 96
          %v357 = vpop.permute.xlu0 %356
          %360 = vst.msk [vmem:[#allocation3] sm:$0xf] %vm347, %v355
          %361 = vst.msk [vmem:[#allocation3 + $0x4] sm:$0xf] %vm347, %v357
          %362 = vrot.lane.b32.xlu0 %v350, 64
          %v363 = vpop.permute.xlu0 %362
          %364 = vrot.lane.b32.xlu0 %v351, 64
          %v365 = vpop.permute.xlu0 %364
          %368 = vst.msk [vmem:[#allocation4] sm:$0xf] %vm347, %v363
          %369 = vst.msk [vmem:[#allocation4 + $0x4] sm:$0xf] %vm347, %v365
        $region56: #{tpu_custom_call.1} parent=39 // pred_fallthru
          _
        %s370 = smul.u32 %s28, 16
        %s371 = sshra.s32 %s370, 3
        %s372 = sand.u32 %s370, 7
        %s373 = smul.addr %s371, 4
        %s374 = scalar_lea.vmem [#allocation2], %s373
        %v375 = vld [vmem:[%s374] sm:$0xf]
        %v376 = vld [vmem:[%s374 + $0x4] sm:$0xf]
        %v377 = vlaneseq
        %v378 = vand.u32 %v377, 127
        %vm379 = vcmp.lt.s32.totalorder %v378, 12
        %v380 = vsel %vm379, 0.0, -1e+30
        %v381 = vld [vmem:[#allocation3] sm:$0xf]
        %v382 = vld [vmem:[#allocation3 + $0x4] sm:$0xf]
        %v383 = vld [vmem:[#allocation4] sm:$0xf]
        %v384 = vld [vmem:[#allocation4 + $0x4] sm:$0xf]
        %v387 = vunpack.c.l.b16 %v375
        %v388 = vunpack.c.l.b16 %v376
        %v389 = vpack.c.b16 %v388, %v387
        %v392 = vunpack.c.l.b16 %v381
        %v393 = vunpack.c.l.b16 %v382
        %v394 = vpack.c.b16 %v393, %v392
        %vm395 = vcmask 64512
        %v397 = vsel %vm395, %v389, 0
        %v400 = vsel %vm395, %v394, 0
        %402 = vmatpush.bf16.xpose.msra.mxu0 0
        %403 = vmatpush.bf16.xpose.msra.mxu0 0
        %404 = vmatpush.bf16.xpose.msra.mxu0 0
        %405 = vmatpush.bf16.xpose.msra.mxu0 0
        %406 = vmatpush.bf16.xpose.msra.mxu0 0
        %407 = vmatpush.bf16.xpose.msra.mxu0 0
        %408 = vmatpush.bf16.xpose.msra.mxu0 0
        %409 = vmatpush.bf16.xpose.msra.mxu0 %v400
        %410 = vmatmul.bf16.gmra.mxu0 %v397
        %v411 = vpop.f32.mrf.mxu0
        %v412 = vadd.f32 %v380, %v411
        %v413 = vpop.f32.mrf.mxu0
        %v414 = vadd.f32 %v380, %v413
        %415 = vdwg.mxu0
        %vm416 = vcmask 130048
        %v417 = vsel %vm416, %v412, -inf
        %418 = vmax.xlane.f32.xlu0 %v417
        %v419 = vpop.xlane.xlu0 %418
        %v420 = vsel %vm416, %v414, -inf
        %421 = vmax.xlane.f32.xlu0 %v420
        %v422 = vpop.xlane.xlu0 %421
        %v423 = vsub.f32 %v412, %v419
        %v424 = vsub.f32 %v414, %v422
        %v425 = vmul.f32 %v423, 1.442695
        %v426 = vpow.pop %v425
        %v427 = vmul.f32 %v424, 1.442695
        %v428 = vpow.pop %v427
        %v429 = vsel %vm416, %v426, 0.0
        %430 = vadd.xlane.f32.xlu0 %v429
        %v431 = vpop.xlane.xlu0 %430
        %v432 = vsel %vm416, %v428, 0.0
        %433 = vadd.xlane.f32.xlu0 %v432
        %v434 = vpop.xlane.xlu0 %433
        %v435 = vrcp.pop %v431
        %v436 = vrcp.pop %v434
        %v437 = vmul.f32 %v426, %v435
        %v438 = vmul.f32 %v428, %v436
        %v439 = vpack.c.bf16 %v438, %v437
        %v442 = vunpack.c.l.b16 %v383
        %v443 = vunpack.c.l.b16 %v384
        %v444 = vpack.c.b16 %v443, %v442
        %v447 = vsel %vm416, %v439, 0
        %449 = vmatpush.bf16.msra.mxu0 0
        %450 = vmatpush.bf16.msra.mxu0 0
        %451 = vmatpush.bf16.msra.mxu0 0
        %452 = vmatpush.bf16.msra.mxu0 0
        %453 = vmatpush.bf16.msra.mxu0 0
        %454 = vmatpush.bf16.msra.mxu0 0
        %455 = vmatpush.bf16.msra.mxu0 0
        %456 = vmatpush.bf16.msra.mxu0 %v444
        %457 = vmatmul.bf16.gmra.mxu0 %v447
        %v458 = vpop.f32.mrf.mxu0
        %v459 = vadd.f32 0.0, %v458
        %v460 = vpop.f32.mrf.mxu0
        %v461 = vadd.f32 0.0, %v460
        %462 = vdwg.mxu0
        %v463 = vpack.c.bf16 %v461, %v459
        %v464 = vld [vmem:[#allocation10] sm:$0xf]
        %465 = vrot.lane.b32.xlu0 %v389, 120
        %v466 = vpop.permute.xlu0 %465
        %467 = vrot.lane.b32.xlu0 %v394, 120
        %v468 = vpop.permute.xlu0 %467
        %v470 = vsel %vm395, %v466, 0
        %v473 = vsel %vm395, %v468, 0
        %475 = vmatpush.bf16.xpose.msra.mxu0 0
        %476 = vmatpush.bf16.xpose.msra.mxu0 0
        %477 = vmatpush.bf16.xpose.msra.mxu0 0
        %478 = vmatpush.bf16.xpose.msra.mxu0 0
        %479 = vmatpush.bf16.xpose.msra.mxu0 0
        %480 = vmatpush.bf16.xpose.msra.mxu0 0
        %481 = vmatpush.bf16.xpose.msra.mxu0 0
        %482 = vmatpush.bf16.xpose.msra.mxu0 %v473
        %483 = vmatmul.bf16.gmra.mxu0 %v470
        %v484 = vpop.f32.mrf.mxu0
        %v485 = vadd.f32 %v380, %v484
        %v486 = vpop.f32.mrf.mxu0
        %v487 = vadd.f32 %v380, %v486
        %488 = vdwg.mxu0
        %v489 = vsel %vm416, %v485, -inf
        %490 = vmax.xlane.f32.xlu0 %v489
        %v491 = vpop.xlane.xlu0 %490
        %v492 = vsel %vm416, %v487, -inf
        %493 = vmax.xlane.f32.xlu0 %v492
        %v494 = vpop.xlane.xlu0 %493
        %v495 = vsub.f32 %v485, %v491
        %v496 = vsub.f32 %v487, %v494
        %v497 = vmul.f32 %v495, 1.442695
        %v498 = vpow.pop %v497
        %v499 = vmul.f32 %v496, 1.442695
        %v500 = vpow.pop %v499
        %v501 = vsel %vm416, %v498, 0.0
        %502 = vadd.xlane.f32.xlu0 %v501
        %v503 = vpop.xlane.xlu0 %502
        %v504 = vsel %vm416, %v500, 0.0
        %505 = vadd.xlane.f32.xlu0 %v504
        %v506 = vpop.xlane.xlu0 %505
        %v507 = vrcp.pop %v503
        %v508 = vrcp.pop %v506
        %v509 = vmul.f32 %v498, %v507
        %v510 = vmul.f32 %v500, %v508
        %v511 = vpack.c.bf16 %v510, %v509
        %512 = vrot.lane.b32.xlu0 %v444, 120
        %v513 = vpop.permute.xlu0 %512
        %v516 = vsel %vm416, %v511, 0
        %518 = vmatpush.bf16.msra.mxu0 0
        %519 = vmatpush.bf16.msra.mxu0 0
        %520 = vmatpush.bf16.msra.mxu0 0
        %521 = vmatpush.bf16.msra.mxu0 0
        %522 = vmatpush.bf16.msra.mxu0 0
        %523 = vmatpush.bf16.msra.mxu0 0
        %524 = vmatpush.bf16.msra.mxu0 0
        %525 = vmatpush.bf16.msra.mxu0 %v513
        %526 = vmatmul.bf16.gmra.mxu0 %v516
        %v527 = vpop.f32.mrf.mxu0
        %v528 = vadd.f32 0.0, %v527
        %v529 = vpop.f32.mrf.mxu0
        %v530 = vadd.f32 0.0, %v529
        %531 = vdwg.mxu0
        %v532 = vpack.c.bf16 %v530, %v528
        %v533 = vld [vmem:[#allocation10 + $0x4] sm:$0xf]
        %v535 = vsel %vm395, %v532, 0
        %vm537 = vcmask 1043456
        %v539 = vsel %vm537, %v533, 0
        %541 = vmatpush.bf16.msra.mxu0 0
        %542 = vmatpush.bf16.msra.mxu0 0
        %543 = vmatpush.bf16.msra.mxu0 0
        %544 = vmatpush.bf16.msra.mxu0 0
        %545 = vmatpush.bf16.msra.mxu0 0
        %546 = vmatpush.bf16.msra.mxu0 0
        %547 = vmatpush.bf16.msra.mxu0 0
        %548 = vmatpush.bf16.msra.mxu0 %v539
        %549 = vmatmul.bf16.gmra.mxu0 %v535
        %v550 = vpop.f32.mrf.mxu0
        %v551 = vadd.f32 0.0, %v550
        %v552 = vpop.f32.mrf.mxu0
        %v553 = vadd.f32 0.0, %v552
        %554 = vdwg.mxu0
        %v556 = vsel %vm395, %v463, 0
        %v559 = vsel %vm537, %v464, 0
        %561 = vmatpush.bf16.msra.mxu0 0
        %562 = vmatpush.bf16.msra.mxu0 0
        %563 = vmatpush.bf16.msra.mxu0 0
        %564 = vmatpush.bf16.msra.mxu0 0
        %565 = vmatpush.bf16.msra.mxu0 0
        %566 = vmatpush.bf16.msra.mxu0 0
        %567 = vmatpush.bf16.msra.mxu0 0
        %568 = vmatpush.bf16.msra.mxu0 %v559
        %569 = vmatmul.bf16.gmra.mxu0 %v556
        %v570 = vpop.f32.mrf.mxu0
        %v571 = vadd.f32 %v551, %v570
        %v572 = vpop.f32.mrf.mxu0
        %v573 = vadd.f32 %v553, %v572
        %574 = vdwg.mxu0
        %575 = vrot.lane.b32.xlu0 %v389, 112
        %v576 = vpop.permute.xlu0 %575
        %577 = vrot.lane.b32.xlu0 %v394, 112
        %v578 = vpop.permute.xlu0 %577
        %v580 = vsel %vm395, %v576, 0
        %v583 = vsel %vm395, %v578, 0
        %585 = vmatpush.bf16.xpose.msra.mxu0 0
        %586 = vmatpush.bf16.xpose.msra.mxu0 0
        %587 = vmatpush.bf16.xpose.msra.mxu0 0
        %588 = vmatpush.bf16.xpose.msra.mxu0 0
        %589 = vmatpush.bf16.xpose.msra.mxu0 0
        %590 = vmatpush.bf16.xpose.msra.mxu0 0
        %591 = vmatpush.bf16.xpose.msra.mxu0 0
        %592 = vmatpush.bf16.xpose.msra.mxu0 %v583
        %593 = vmatmul.bf16.gmra.mxu0 %v580
        %v594 = vpop.f32.mrf.mxu0
        %v595 = vadd.f32 %v380, %v594
        %v596 = vpop.f32.mrf.mxu0
        %v597 = vadd.f32 %v380, %v596
        %598 = vdwg.mxu0
        %v599 = vsel %vm416, %v595, -inf
        %600 = vmax.xlane.f32.xlu0 %v599
        %v601 = vpop.xlane.xlu0 %600
        %v602 = vsel %vm416, %v597, -inf
        %603 = vmax.xlane.f32.xlu0 %v602
        %v604 = vpop.xlane.xlu0 %603
        %v605 = vsub.f32 %v595, %v601
        %v606 = vsub.f32 %v597, %v604
        %v607 = vmul.f32 %v605, 1.442695
        %v608 = vpow.pop %v607
        %v609 = vmul.f32 %v606, 1.442695
        %v610 = vpow.pop %v609
        %v611 = vsel %vm416, %v608, 0.0
        %612 = vadd.xlane.f32.xlu0 %v611
        %v613 = vpop.xlane.xlu0 %612
        %v614 = vsel %vm416, %v610, 0.0
        %615 = vadd.xlane.f32.xlu0 %v614
        %v616 = vpop.xlane.xlu0 %615
        %v617 = vrcp.pop %v613
        %v618 = vrcp.pop %v616
        %v619 = vmul.f32 %v608, %v617
        %v620 = vmul.f32 %v610, %v618
        %v621 = vpack.c.bf16 %v620, %v619
        %622 = vrot.lane.b32.xlu0 %v444, 112
        %v623 = vpop.permute.xlu0 %622
        %v626 = vsel %vm416, %v621, 0
        %628 = vmatpush.bf16.msra.mxu0 0
        %629 = vmatpush.bf16.msra.mxu0 0
        %630 = vmatpush.bf16.msra.mxu0 0
        %631 = vmatpush.bf16.msra.mxu0 0
        %632 = vmatpush.bf16.msra.mxu0 0
        %633 = vmatpush.bf16.msra.mxu0 0
        %634 = vmatpush.bf16.msra.mxu0 0
        %635 = vmatpush.bf16.msra.mxu0 %v623
        %636 = vmatmul.bf16.gmra.mxu0 %v626
        %v637 = vpop.f32.mrf.mxu0
        %v638 = vadd.f32 0.0, %v637
        %v639 = vpop.f32.mrf.mxu0
        %v640 = vadd.f32 0.0, %v639
        %641 = vdwg.mxu0
        %v642 = vpack.c.bf16 %v640, %v638
        %v643 = vld [vmem:[#allocation10 + $0x8] sm:$0xf]
        %v645 = vsel %vm395, %v642, 0
        %v648 = vsel %vm537, %v643, 0
        %650 = vmatpush.bf16.msra.mxu0 0
        %651 = vmatpush.bf16.msra.mxu0 0
        %652 = vmatpush.bf16.msra.mxu0 0
        %653 = vmatpush.bf16.msra.mxu0 0
        %654 = vmatpush.bf16.msra.mxu0 0
        %655 = vmatpush.bf16.msra.mxu0 0
        %656 = vmatpush.bf16.msra.mxu0 0
        %657 = vmatpush.bf16.msra.mxu0 %v648
        %658 = vmatmul.bf16.gmra.mxu0 %v645
        %v659 = vpop.f32.mrf.mxu0
        %v660 = vadd.f32 0.0, %v659
        %v661 = vpop.f32.mrf.mxu0
        %v662 = vadd.f32 0.0, %v661
        %663 = vdwg.mxu0
        %v664 = vadd.f32 %v571, %v660
        %v665 = vadd.f32 %v573, %v662
        %666 = vrot.lane.b32.xlu0 %v389, 104
        %v667 = vpop.permute.xlu0 %666
        %668 = vrot.lane.b32.xlu0 %v394, 104
        %v669 = vpop.permute.xlu0 %668
        %v671 = vsel %vm395, %v667, 0
        %v674 = vsel %vm395, %v669, 0
        %676 = vmatpush.bf16.xpose.msra.mxu0 0
        %677 = vmatpush.bf16.xpose.msra.mxu0 0
        %678 = vmatpush.bf16.xpose.msra.mxu0 0
        %679 = vmatpush.bf16.xpose.msra.mxu0 0
        %680 = vmatpush.bf16.xpose.msra.mxu0 0
        %681 = vmatpush.bf16.xpose.msra.mxu0 0
        %682 = vmatpush.bf16.xpose.msra.mxu0 0
        %683 = vmatpush.bf16.xpose.msra.mxu0 %v674
        %684 = vmatmul.bf16.gmra.mxu0 %v671
        %v685 = vpop.f32.mrf.mxu0
        %v686 = vadd.f32 %v380, %v685
        %v687 = vpop.f32.mrf.mxu0
        %v688 = vadd.f32 %v380, %v687
        %689 = vdwg.mxu0
        %v690 = vsel %vm416, %v686, -inf
        %691 = vmax.xlane.f32.xlu0 %v690
        %v692 = vpop.xlane.xlu0 %691
        %v693 = vsel %vm416, %v688, -inf
        %694 = vmax.xlane.f32.xlu0 %v693
        %v695 = vpop.xlane.xlu0 %694
        %v696 = vsub.f32 %v686, %v692
        %v697 = vsub.f32 %v688, %v695
        %v698 = vmul.f32 %v696, 1.442695
        %v699 = vpow.pop %v698
        %v700 = vmul.f32 %v697, 1.442695
        %v701 = vpow.pop %v700
        %v702 = vsel %vm416, %v699, 0.0
        %703 = vadd.xlane.f32.xlu0 %v702
        %v704 = vpop.xlane.xlu0 %703
        %v705 = vsel %vm416, %v701, 0.0
        %706 = vadd.xlane.f32.xlu0 %v705
        %v707 = vpop.xlane.xlu0 %706
        %v708 = vrcp.pop %v704
        %v709 = vrcp.pop %v707
        %v710 = vmul.f32 %v699, %v708
        %v711 = vmul.f32 %v701, %v709
        %v712 = vpack.c.bf16 %v711, %v710
        %713 = vrot.lane.b32.xlu0 %v444, 104
        %v714 = vpop.permute.xlu0 %713
        %v717 = vsel %vm416, %v712, 0
        %719 = vmatpush.bf16.msra.mxu0 0
        %720 = vmatpush.bf16.msra.mxu0 0
        %721 = vmatpush.bf16.msra.mxu0 0
        %722 = vmatpush.bf16.msra.mxu0 0
        %723 = vmatpush.bf16.msra.mxu0 0
        %724 = vmatpush.bf16.msra.mxu0 0
        %725 = vmatpush.bf16.msra.mxu0 0
        %726 = vmatpush.bf16.msra.mxu0 %v714
        %727 = vmatmul.bf16.gmra.mxu0 %v717
        %v728 = vpop.f32.mrf.mxu0
        %v729 = vadd.f32 0.0, %v728
        %v730 = vpop.f32.mrf.mxu0
        %v731 = vadd.f32 0.0, %v730
        %732 = vdwg.mxu0
        %v733 = vpack.c.bf16 %v731, %v729
        %v734 = vld [vmem:[#allocation10 + $0xc] sm:$0xf]
        %v736 = vsel %vm395, %v733, 0
        %v739 = vsel %vm537, %v734, 0
        %741 = vmatpush.bf16.msra.mxu0 0
        %742 = vmatpush.bf16.msra.mxu0 0
        %743 = vmatpush.bf16.msra.mxu0 0
        %744 = vmatpush.bf16.msra.mxu0 0
        %745 = vmatpush.bf16.msra.mxu0 0
        %746 = vmatpush.bf16.msra.mxu0 0
        %747 = vmatpush.bf16.msra.mxu0 0
        %748 = vmatpush.bf16.msra.mxu0 %v739
        %749 = vmatmul.bf16.gmra.mxu0 %v736
        %v750 = vpop.f32.mrf.mxu0
        %v751 = vadd.f32 0.0, %v750
        %v752 = vpop.f32.mrf.mxu0
        %v753 = vadd.f32 0.0, %v752
        %754 = vdwg.mxu0
        %v755 = vadd.f32 %v664, %v751
        %v756 = vadd.f32 %v665, %v753
        %v757 = vld [vmem:[%s4] sm:$0x1]
        %v759 = vperm.slane %v757, 0
        %v761 = vadd.f32 %v755, %v759
        %v762 = vadd.f32 %v756, %v759
        %vm763 = vcmask 261120
        %764 = vst.msk [vmem:[%s291] sm:$0xff] %vm763, %v761
        %765 = vst.msk [vmem:[%s291 + $0x8] sm:$0xff] %vm763, %v762
        %s766 = sand.u32 %s155, 1
        %s767 = scalar_lea.sflag [#allocation7], %s766
        %s768 = sand.u32 %s155, 1
        %s769 = smul.addr %s768, 16
        %s770 = scalar_lea.vmem [#allocation11], %s769
        // Predicated region
        $region57: #{tpu_custom_call.1} parent=39 // pred_check
          %p771 = pneg %p165
        $region58: #{tpu_custom_call.1} parent=39 // pred_check_branch
          %773 = sbr.rel (%p771) target = $region60
        $region59: #{tpu_custom_call.1} parent=39 // pred_region
          %s774 = smul.u32 2, %s28
          %776 = vsyncadd %s767, 0
          %s777 = smul.addr %s27, 2
          %s778 = sadd.s32 %s774, %s777
          %s779 = smul.addr %s778, 8
          %s780 = scalar_lea.hbm %s5, %s779
          %s781 = sshll.u32 %s770, 4
          %s782 = int_to_ptr.vmem [resolvable:$true] %s781
          %s783 = sshll.u32 %s780, 4
          %s784 = int_to_ptr.hbm [resolvable:$true] %s783
          %789 = dma.vmem_to_hbm [thread:$0]  %s782, 256, %s784, %s767, 128, 128, 8
        $region60: #{tpu_custom_call.1} parent=39 // pred_fallthru
          _
      $region40: #{tpu_custom_call.1} parent=5 // pred_fallthru
        _
      %p790 = scmp.le.s32.totalorder 2, %s18
      // Predicated region
      $region61: #{tpu_custom_call.1} parent=5 // pred_check
        %p791 = pneg %p790
      $region62: #{tpu_custom_call.1} parent=5 // pred_check_branch
        %793 = sbr.rel (%p791) target = $region64
      $region63: #{tpu_custom_call.1} parent=5 // pred_region
        %s794 = ssub.s32 %s18, 2
        // Predicated region
        $region65: #{tpu_custom_call.1} parent=63 // pred_check
          %p795 = pneg %p171
        $region66: #{tpu_custom_call.1} parent=63 // pred_check_branch
          %797 = sbr.rel (%p795) target = $region68
        $region67: #{tpu_custom_call.1} parent=63 // pred_region
          %s798 = sand.u32 %s156, 1
          %s799 = scalar_lea.sflag [#allocation7], %s798
          %s800 = sand.u32 %s156, 1
          %s801 = smul.addr %s800, 16
          %s802 = scalar_lea.vmem [#allocation11], %s801
          %804 = dma.done %s799, 256
        $region68: #{tpu_custom_call.1} parent=63 // pred_fallthru
          _
      $region64: #{tpu_custom_call.1} parent=5 // pred_fallthru
        _
    $region6: #{tpu_custom_call.1} parent=1 // loop_footer
      %s22 = sadd.s32 1, %s18
    $region7: #{tpu_custom_call.1} parent=1 // loop_footer_branch
      %17 = sbr.rel target = $region3
    $region8: #{tpu_custom_call.1} parent=1 // loop_exit
      _
    %805 = vsyncpa [#allocation6], 1
    %s806 = scalar_lea.sflag [#allocation6], 1
    %807 = vsyncpa %s806, 1
    %808 = vsyncpa [#allocation9], 1
    %809 = vsyncpa [#allocation7], 1
    %s810 = scalar_lea.sflag [#allocation7], 1
    %811 = vsyncpa %s810, 1

</llo_original>
